<compile_context>
chip_gen: v7x
topology: tpu7x:2x2x1
jax: 0.10.0
libtpu: 0.0.40
codegen_flags: <defaults>
</compile_context>

<pallas_src>
import functools

import jax
import jax.numpy as jnp
from jax.experimental import pallas as pl
from jax.experimental.pallas import tpu as pltpu


# ---------------------------------------------------------------------------
# Small helpers / chip profile
# ---------------------------------------------------------------------------
def _round_up(x, m):
    return ((x + m - 1) // m) * m


def _cdiv(a, b):
    return -(-a // b)


def _chip_profile():
    """(generation, physical VMEM bytes per TensorCore, TensorCores per chip)."""
    kind = ""
    try:
        kind = jax.devices()[0].device_kind.lower()
    except Exception:
        pass
    if "v7" in kind:
        gen = 7
    elif "v6" in kind:
        gen = 6
    elif "v5" in kind:
        gen = 5
    else:
        gen = 6  # unknown: treat like v6e
    vmem_phys = None
    try:
        vmem_phys = int(pltpu.get_tpu_info().vmem_capacity_bytes)
    except Exception:
        vmem_phys = None
    if not vmem_phys:
        vmem_phys = (64 << 20) if gen >= 7 else (128 << 20)
    num_tc = 2 if gen >= 7 else 1
    return gen, vmem_phys, num_tc


def _token_tile_cap(gen):
    # Ridge points: v5e ~240 FLOP/B, v6e ~650-700, v7x ~310.  Weights stream
    # once per token tile, so arithmetic intensity ~ block_t (bf16 weights).
    return {5: 256, 6: 768, 7: 512}.get(gen, 512)


def _vmem_needed(block_t, block_i, H, x_bytes, w_bytes, o_bytes):
    """VMEM footprint: double-buffered streamed tiles + resident scratch
    + in-kernel f32 temporaries + Mosaic internal-scratch margin."""
    x_tile = 2 * block_t * H * x_bytes                # double-buffered x tile
    wgu_tile = 2 * (H * 2 * block_i) * w_bytes        # double-buffered gate||up
    wd_tile = 2 * (block_i * H) * w_bytes             # double-buffered down slab
    out_tile = 2 * block_t * H * o_bytes
    acc = block_t * H * 4                             # f32 accumulator scratch
    temps = block_t * block_i * 24                    # gu/gate/up/sig/act f32 + bf16 cast
    margin = 2 << 20
    return x_tile + wgu_tile + wd_tile + out_tile + acc + temps + margin


# ---------------------------------------------------------------------------
# Tile selection (generation + VMEM aware)
# ---------------------------------------------------------------------------
def pick_block_i(hidden_size, intermediate_size,
                 w_dtype=jnp.bfloat16, x_dtype=jnp.bfloat16):
    """Pick the intermediate-dim tile once, at weight-load time.

    Budget assumes a prefill-sized token tile (the generation's ridge-point
    cap), so there is always room left to grow block_t at call time."""
    H, I = hidden_size, intermediate_size
    gen, vmem_phys, _ = _chip_profile()
    cap = int(0.88 * vmem_phys)
    x_bytes = jnp.dtype(x_dtype).itemsize
    w_bytes = jnp.dtype(w_dtype).itemsize
    t_cap = _token_tile_cap(gen)

    # block_i must divide I exactly (a ragged reduction block would accumulate
    # garbage weight columns into valid rows).
    cands = sorted({c for c in (4096, 2048, 1024, 512, 256, 128)
                    if c <= I and I % c == 0} | {I}, reverse=True)
    if gen >= 6:
        # K=128 half-fills the 256x256 MXU on v6e/v7x; avoid unless forced.
        filtered = [c for c in cands if c >= 256 or c == I]
        if filtered:
            cands = filtered
    for bi in cands:
        if _vmem_needed(t_cap, bi, H, x_bytes, w_bytes, x_bytes) <= cap:
            return bi
    return cands[-1]


def _pick_block_t(T, H, block_i, x_dtype, w_dtype, gen, vmem_phys):
    cap = int(0.88 * vmem_phys)
    x_bytes = jnp.dtype(x_dtype).itemsize
    w_bytes = jnp.dtype(w_dtype).itemsize
    t_cap = _token_tile_cap(gen)
    t_full = _round_up(T, 8)  # sublane granularity
    cands = sorted({min(c, t_full) for c in
                    (768, 640, 512, 384, 256, 192, 128, 96, 64, 32, 16, 8)
                    if c <= t_cap}, reverse=True)
    for bt in cands:
        if _vmem_needed(bt, block_i, H, x_bytes, w_bytes, x_bytes) <= cap:
            return bt
    return cands[-1] if cands else 8


# ---------------------------------------------------------------------------
# One-time weight preparation (weight-load time, not per forward call)
# ---------------------------------------------------------------------------
def prepare_llama_mlp_weights(w_gate_up, w_down, *, block_i, dtype=jnp.bfloat16):
    """Repack torch-layout weights once.

    w_gate_up: [2*I, H]  (gate rows followed by up rows)
    w_down:    [H, I]
    Returns:
      wgu: [H, 2*I]  per-block (gate||up) slabs of width 2*block_i
      wd:  [I, H]
    """
    two_i, H = w_gate_up.shape
    I = two_i // 2
    assert I % block_i == 0, "block_i must divide intermediate_size"
    n = I // block_i
    wg = w_gate_up[:I, :].T                      # [H, I]
    wu = w_gate_up[I:, :].T                      # [H, I]
    wgu = jnp.concatenate(
        [wg.reshape(H, n, block_i), wu.reshape(H, n, block_i)], axis=2
    ).reshape(H, n * 2 * block_i)
    wd = w_down.T                                # [I, H]
    if dtype is not None:
        wgu = wgu.astype(dtype)
        wd = wd.astype(dtype)
    return wgu, wd


# ---------------------------------------------------------------------------
# Kernel
# ---------------------------------------------------------------------------
def llama_mlp_kernel(x_ref, wgu_ref, wd_ref, o_ref, acc_ref, *,
                     block_i, approx_sigmoid):
    # x_ref:   (block_t, H)
    # wgu_ref: (H, 2*block_i)   fused gate||up slab for this intermediate block
    # wd_ref:  (block_i, H)     down-projection slab for this intermediate block
    # o_ref:   (1, block_t, H)  partial output for (split, token-tile)
    # acc_ref: (block_t, H) f32 scratch accumulator
    i = pl.program_id(2)

    @pl.when(i == 0)
    def _():
        acc_ref[...] = jnp.zeros_like(acc_ref)

    x = x_ref[...]
    # One fused MXU matmul for gate and up.
    gu = jnp.dot(x, wgu_ref[...], preferred_element_type=jnp.float32)
    gate = gu[:, :block_i]
    up = gu[:, block_i:]

    # silu(gate) * up in f32; reciprocal goes to the EUP when approx is on.
    sig = pl.reciprocal(1.0 + jnp.exp(-gate), approx=approx_sigmoid)
    act = gate * sig * up

    acc_ref[...] += jnp.dot(act.astype(wd_ref.dtype), wd_ref[...],
                            preferred_element_type=jnp.float32)

    @pl.when(i == pl.num_programs(2) - 1)
    def _():
        o_ref[0] = acc_ref[...].astype(o_ref.dtype)


# ---------------------------------------------------------------------------
# Forward wrapper
# ---------------------------------------------------------------------------
def llama_mlp(x, wgu, wd, *, block_i, block_t=None, approx_sigmoid=None,
              num_splits=None):
    """x: [T, H]; wgu/wd from prepare_llama_mlp_weights. Returns [T, H]."""
    T, H = x.shape
    I, H2 = wd.shape
    assert H2 == H and wgu.shape == (H, 2 * I) and I % block_i == 0
    assert x.dtype == wgu.dtype == wd.dtype, "cast x/weights to a common dtype"

    gen, vmem_phys, num_tc = _chip_profile()
    x_bytes = jnp.dtype(x.dtype).itemsize
    w_bytes = jnp.dtype(wgu.dtype).itemsize

    if block_t is None:
        block_t = _pick_block_t(T, H, block_i, x.dtype, wgu.dtype, gen, vmem_phys)
    block_t = max(8, _round_up(min(block_t, _round_up(T, 8)), 8))

    n_t = _cdiv(T, block_t)          # ragged last tile handled by Pallas masking
    n_i_total = I // block_i

    # v7x decode: split the reduction across the 2 TensorCores.
    if num_splits is None:
        n_split = num_tc if (num_tc >= 2 and n_t == 1 and
                             n_i_total >= num_tc and n_i_total % num_tc == 0) else 1
    else:
        n_split = num_splits
    assert n_i_total % n_split == 0
    n_i = n_i_total // n_split

    partial_dtype = jnp.float32 if n_split > 1 else x.dtype
    o_bytes = jnp.dtype(partial_dtype).itemsize

    if approx_sigmoid is None:
        approx_sigmoid = jnp.dtype(x.dtype) != jnp.dtype(jnp.float32)

    needed = _vmem_needed(block_t, block_i, H, x_bytes, w_bytes, o_bytes)
    vmem_limit = int(min(0.9 * vmem_phys, max(needed + (4 << 20), 32 << 20)))

    cost = pl.CostEstimate(
        flops=6 * T * H * I,                 # 2*T*H*2I (gate_up) + 2*T*I*H (down)
        transcendentals=T * I,               # exp in silu
        bytes_accessed=(T * H * x_bytes + n_split * T * H * o_bytes
                        + n_t * (wgu.size + wd.size) * w_bytes),
    )

    kernel = functools.partial(llama_mlp_kernel, block_i=block_i,
                               approx_sigmoid=bool(approx_sigmoid))

    out = pl.pallas_call(
        kernel,
        out_shape=jax.ShapeDtypeStruct((n_split, T, H), partial_dtype),
        grid_spec=pltpu.PrefetchScalarGridSpec(
            num_scalar_prefetch=0,
            grid=(n_split, n_t, n_i),
            in_specs=[
                # x tile over tokens (constant across split + reduction axes)
                pl.BlockSpec((block_t, H), lambda c, t, i: (t, 0)),
                # fused gate||up weight slab, streamed over intermediate blocks
                pl.BlockSpec((H, 2 * block_i), lambda c, t, i: (0, c * n_i + i)),
                # down-projection slab, streamed over intermediate blocks
                pl.BlockSpec((block_i, H), lambda c, t, i: (c * n_i + i, 0)),
            ],
            out_specs=pl.BlockSpec((1, block_t, H), lambda c, t, i: (c, t, 0)),
            scratch_shapes=[pltpu.VMEM((block_t, H), jnp.float32)],
        ),
        compiler_params=pltpu.CompilerParams(
            dimension_semantics=("parallel", "parallel", "arbitrary"),
            vmem_limit_bytes=vmem_limit,
        ),
        cost_estimate=cost,
    )(x, wgu, wd)

    if n_split > 1:
        return out.sum(axis=0).astype(x.dtype)
    return out[0]


# ---------------------------------------------------------------------------
# Pure-JAX reference
# ---------------------------------------------------------------------------
def llama_mlp_reference(x, w_gate_up, w_down):
    gate_up = x @ w_gate_up.T
    I = w_gate_up.shape[0] // 2
    gate, up = gate_up[:, :I], gate_up[:, I:]
    act = (gate * jax.nn.sigmoid(gate)) * up
    return act @ w_down.T


if __name__ == "__main__":
    # Small shapes consistent with LlamaMLP(hidden_size=32, intermediate_size=64, 'silu')
    T, H, I = 16, 32, 64
    key = jax.random.PRNGKey(0)
    kx, kgu, kd = jax.random.split(key, 3)

    x = jax.random.normal(kx, (T, H), dtype=jnp.float32)
    # Deterministic synthetic parameters in torch Linear layout ([out, in]).
    w_gate_up = jax.random.normal(kgu, (2 * I, H), dtype=jnp.float32) * 0.05
    w_down = jax.random.normal(kd, (H, I), dtype=jnp.float32) * 0.05

    ref = llama_mlp_reference(x, w_gate_up, w_down)

    # --- f32 path (exact sigmoid), tight tolerance -------------------------
    bi32 = pick_block_i(H, I, w_dtype=jnp.float32, x_dtype=jnp.float32)
    wgu32, wd32 = prepare_llama_mlp_weights(w_gate_up, w_down,
                                            block_i=bi32, dtype=jnp.float32)
    out32 = jax.block_until_ready(llama_mlp(x, wgu32, wd32, block_i=bi32))
    assert out32.shape == (T, H)
    assert jnp.allclose(out32, ref, atol=1e-3, rtol=1e-3), "f32 mismatch vs reference"

    # --- bf16 fast path (bf16 weights/activations, EUP approx reciprocal) --
    bi16 = pick_block_i(H, I, w_dtype=jnp.bfloat16, x_dtype=jnp.bfloat16)
    wgu16, wd16 = prepare_llama_mlp_weights(w_gate_up, w_down,
                                            block_i=bi16, dtype=jnp.bfloat16)
    out16 = jax.block_until_ready(
        llama_mlp(x.astype(jnp.bfloat16), wgu16, wd16, block_i=bi16))
    assert out16.shape == (T, H)
    assert jnp.allclose(out16.astype(jnp.float32), ref, atol=2e-2, rtol=2e-2), \
        "bf16 mismatch vs reference"

    print("KERNEL_OK")
</pallas_src>

<mosaic_0001>
module attributes {stable_mosaic.version = 11 : i64} {
  func.func @llama_mlp_kernel(%arg0: i32, %arg1: i32, %arg2: i32, %arg3: memref<16x32xf32, #tpu.memory_space<vmem>>, %arg4: memref<32x128xf32, #tpu.memory_space<vmem>>, %arg5: memref<64x32xf32, #tpu.memory_space<vmem>>, %arg6: memref<1x16x32xf32, #tpu.memory_space<vmem>>, %arg7: memref<16x32xf32, #tpu.memory_space<vmem>>) attributes {dimension_semantics = [#tpu.dimension_semantics<parallel>, #tpu.dimension_semantics<parallel>, #tpu.dimension_semantics<arbitrary>], iteration_bounds = array<i64: 1, 1, 1>, scalar_prefetch = 0 : i64, scratch_operands = 1 : i64, tpu.core_type = #tpu.core_type<tc>, window_params = [{transform_indices = @transform_0, window_bounds = array<i64: 16, 32>}, {transform_indices = @transform_1, window_bounds = array<i64: 32, 128>}, {transform_indices = @transform_2, window_bounds = array<i64: 64, 32>}, {transform_indices = @transform_3, window_bounds = array<i64: 1, 16, 32>}]} {
    %c0_i32 = arith.constant 0 : i32
    %0 = arith.cmpi eq, %arg2, %c0_i32 : i32
    %1 = arith.extui %0 : i1 to i32
    %c0_i32_0 = arith.constant 0 : i32
    %2 = arith.cmpi ne, %1, %c0_i32_0 : i32
    scf.if %2 {
      %cst_15 = arith.constant 0.000000e+00 : f32
      %24 = vector.broadcast %cst_15 : f32 to vector<16x32xf32>
      %c0_16 = arith.constant 0 : index
      %c0_17 = arith.constant 0 : index
      %25 = vector.load %arg7[%c0_16, %c0_17] : memref<16x32xf32, #tpu.memory_space<vmem>>, vector<16x32xf32>
      tpu.vector_store %arg7[%c0_16, %c0_17], %24 {strides = array<i32>} : memref<16x32xf32, #tpu.memory_space<vmem>>, vector<16x32xf32>,
    } else {
    }
    %c0 = arith.constant 0 : index
    %c0_1 = arith.constant 0 : index
    %3 = vector.load %arg3[%c0, %c0_1] : memref<16x32xf32, #tpu.memory_space<vmem>>, vector<16x32xf32>
    %c0_2 = arith.constant 0 : index
    %c0_3 = arith.constant 0 : index
    %4 = vector.load %arg4[%c0_2, %c0_3] : memref<32x128xf32, #tpu.memory_space<vmem>>, vector<32x128xf32>
    %cst = arith.constant dense<0.000000e+00> : vector<16x128xf32>
    %5 = tpu.matmul %3, %4, %cst {dimension_numbers = #tpu.dot_dimension_numbers<[1], [0], [0], [1], [0, 0, 1, 1], [], []>} : vector<16x32xf32>, vector<32x128xf32>, vector<16x128xf32> -> vector<16x128xf32>
    %6 = vector.extract_strided_slice %5 {offsets = [0, 0], sizes = [16, 64], strides = [1, 1]} : vector<16x128xf32> to vector<16x64xf32>
    %7 = vector.extract_strided_slice %5 {offsets = [0, 64], sizes = [16, 64], strides = [1, 1]} : vector<16x128xf32> to vector<16x64xf32>
    %cst_4 = arith.constant 0.000000e+00 : f32
    %8 = vector.broadcast %cst_4 : f32 to vector<16x64xf32>
    %9 = arith.subf %8, %6 : vector<16x64xf32>
    %10 = math.exp %9 : vector<16x64xf32>
    %cst_5 = arith.constant 1.000000e+00 : f32
    %11 = vector.broadcast %cst_5 : f32 to vector<16x64xf32>
    %12 = arith.addf %11, %10 : vector<16x64xf32>
    %13 = tpu.reciprocal %12 : vector<16x64xf32> -> vector<16x64xf32>
    %14 = arith.mulf %6, %13 : vector<16x64xf32>
    %15 = arith.mulf %14, %7 : vector<16x64xf32>
    %c0_6 = arith.constant 0 : index
    %c0_7 = arith.constant 0 : index
    %16 = vector.load %arg7[%c0_6, %c0_7] : memref<16x32xf32, #tpu.memory_space<vmem>>, vector<16x32xf32>
    %c0_8 = arith.constant 0 : index
    %c0_9 = arith.constant 0 : index
    %17 = vector.load %arg5[%c0_8, %c0_9] : memref<64x32xf32, #tpu.memory_space<vmem>>, vector<64x32xf32>
    %cst_10 = arith.constant dense<0.000000e+00> : vector<16x32xf32>
    %18 = tpu.matmul %15, %17, %cst_10 {dimension_numbers = #tpu.dot_dimension_numbers<[1], [0], [0], [1], [0, 0, 1, 1], [], []>} : vector<16x64xf32>, vector<64x32xf32>, vector<16x32xf32> -> vector<16x32xf32>
    %19 = arith.addf %16, %18 : vector<16x32xf32>
    %c0_11 = arith.constant 0 : index
    %c0_12 = arith.constant 0 : index
    %20 = vector.load %arg7[%c0_11, %c0_12] : memref<16x32xf32, #tpu.memory_space<vmem>>, vector<16x32xf32>
    tpu.vector_store %arg7[%c0_11, %c0_12], %19 {strides = array<i32>} : memref<16x32xf32, #tpu.memory_space<vmem>>, vector<16x32xf32>,
    %c0_i32_13 = arith.constant 0 : i32
    %21 = arith.cmpi eq, %arg2, %c0_i32_13 : i32
    %22 = arith.extui %21 : i1 to i32
    %c0_i32_14 = arith.constant 0 : i32
    %23 = arith.cmpi ne, %22, %c0_i32_14 : i32
    scf.if %23 {
      %c0_15 = arith.constant 0 : index
      %c0_16 = arith.constant 0 : index
      %24 = vector.load %arg7[%c0_15, %c0_16] : memref<16x32xf32, #tpu.memory_space<vmem>>, vector<16x32xf32>
      %c0_17 = arith.constant 0 : index
      %c0_18 = arith.constant 0 : index
      %c0_19 = arith.constant 0 : index
      %25 = vector.load %arg6[%c0_17, %c0_18, %c0_19] : memref<1x16x32xf32, #tpu.memory_space<vmem>>, vector<1x16x32xf32>
      %26 = vector.shape_cast %25 : vector<1x16x32xf32> to vector<16x32xf32>
      %27 = vector.shape_cast %24 : vector<16x32xf32> to vector<1x16x32xf32>
      tpu.vector_store %arg6[%c0_17, %c0_18, %c0_19], %27 {strides = array<i32>} : memref<1x16x32xf32, #tpu.memory_space<vmem>>, vector<1x16x32xf32>,
    } else {
    }
    return
  }
  func.func @transform_0(%arg0: i32, %arg1: i32, %arg2: i32) -> (i32, i32) {
    %c0_i32 = arith.constant 0 : i32
    %c0_i32_0 = arith.constant 0 : i32
    return %arg1, %c0_i32 : i32, i32
  }
  func.func @transform_1(%arg0: i32, %arg1: i32, %arg2: i32) -> (i32, i32) {
    %c1_i32 = arith.constant 1 : i32
    %0 = arith.muli %arg0, %c1_i32 : i32
    %1 = arith.addi %0, %arg2 : i32
    %c0_i32 = arith.constant 0 : i32
    %c0_i32_0 = arith.constant 0 : i32
    return %c0_i32, %1 : i32, i32
  }
  func.func @transform_2(%arg0: i32, %arg1: i32, %arg2: i32) -> (i32, i32) {
    %c1_i32 = arith.constant 1 : i32
    %0 = arith.muli %arg0, %c1_i32 : i32
    %1 = arith.addi %0, %arg2 : i32
    %c0_i32 = arith.constant 0 : i32
    %c0_i32_0 = arith.constant 0 : i32
    return %1, %c0_i32 : i32, i32
  }
  func.func @transform_3(%arg0: i32, %arg1: i32, %arg2: i32) -> (i32, i32, i32) {
    %c0_i32 = arith.constant 0 : i32
    %c0_i32_0 = arith.constant 0 : i32
    return %arg0, %arg1, %c0_i32 : i32, i32, i32
  }
}

</mosaic_0001>

<llo_original>
// kernel: tpu_custom_call.1
$region0: #{tpu_custom_call.1}
  #allocation0 [shape = 'u32[]', space=smem, size = 0x4, offset = 0x4, fixed_abs, tag = 'smem constant byte address 0x4 - core index']
  #allocation1 [shape = 'u32[144,128]{1,0:T(1,128)}', space=vmem, size = 0x12000, scoped, tag = 'internal scratch']
  #allocation2 [shape = 'f32[16,32]{1,0:T(8,128)}', space=vmem, size = 0x2000, scoped, tag = 'scratch operand']
  %s0 = inlined_call_operand.vmem [shape: f32[16,32], index: 0, kind: input, shape index: {}]
  %s1 = inlined_call_operand.vmem [shape: f32[32,128], index: 1, kind: input, shape index: {}]
  %s2 = inlined_call_operand.vmem [shape: f32[64,32], index: 2, kind: input, shape index: {}]
  %s3 = inlined_call_operand.hbm [shape: f32[1,16,32], index: 3, kind: output, shape index: {}]
  %s4 = sld [smem:[#allocation0]]
  $region30: #{tpu_custom_call.1} parent=0
    _
  %s6 = ssub.s32 1, %s4
  %s7 = scalar_select 0, %s6, %s4
  $region1: #{tpu_custom_call.1} parent=0
    #allocation3 [shape = 'u8[8192]{0}', space=vmem, size = 0x2000, scoped, tag = 'output window, operand 0, single buffered']
    #allocation4 [shape = 's32[1]{0}', space=sflag, size = 0x4, scoped, tag = 'scoped memory for tpu_custom_call.1']
    %8 = vsyncpa [#allocation4], 0
    // Predicated region
    $region2: #{tpu_custom_call.1} parent=1 // pred_check
      _
    $region3: #{tpu_custom_call.1} parent=1 // pred_check_branch
      %10 = sbr.rel (0) target = $region5
    $region4: #{tpu_custom_call.1} parent=1 // pred_region
      _
    $region5: #{tpu_custom_call.1} parent=1 // pred_fallthru
      _
    // Predicated region
    $region6: #{tpu_custom_call.1} parent=1 // pred_check
      _
    $region7: #{tpu_custom_call.1} parent=1 // pred_check_branch
      %12 = sbr.rel (0) target = $region9
    $region8: #{tpu_custom_call.1} parent=1 // pred_region
      %s13 = sadd.s32 0, 0
      %p14 = scmp.lt.s32.totalorder %s13, 0
      %s15 = scalar_select %p14, %s13, 0
      %s16 = smul.addr %s15, 8
      %s17 = scalar_lea.vmem %s1, %s16
      %s18 = sadd.s32 0, 0
    $region9: #{tpu_custom_call.1} parent=1 // pred_fallthru
      _
    // Predicated region
    $region10: #{tpu_custom_call.1} parent=1 // pred_check
      _
    $region11: #{tpu_custom_call.1} parent=1 // pred_check_branch
      %20 = sbr.rel (0) target = $region13
    $region12: #{tpu_custom_call.1} parent=1 // pred_region
      %s21 = sadd.s32 0, 0
      %s22 = smul.u32 8, %s21
      %p23 = scmp.lt.s32.totalorder %s22, 7
      %s24 = scalar_select %p23, %s22, 7
      %s25 = smul.addr %s24, 8
      %s26 = scalar_lea.vmem %s2, %s25
      %s27 = sadd.s32 0, 0
      %s28 = smul.u32 8, %s27
    $region13: #{tpu_custom_call.1} parent=1 // pred_fallthru
      _
    %s29 = sadd.s32 0, 0
    %p30 = scmp.lt.s32.totalorder %s29, 0
    %s31 = scalar_select %p30, %s29, 0
    %s32 = smul.addr %s31, 8
    %s33 = scalar_lea.vmem %s1, %s32
    %s34 = sadd.s32 0, 0
    %s35 = smul.u32 8, %s34
    %p36 = scmp.lt.s32.totalorder %s35, 7
    %s37 = scalar_select %p36, %s35, 7
    %s38 = smul.addr %s37, 8
    %s39 = scalar_lea.vmem %s2, %s38
    %s40 = sadd.s32 0, 0
    %p41 = scmp.lt.s32.totalorder %s40, 0
    %s42 = scalar_select %p41, %s40, 0
    %s43 = smul.addr %s42, 8
    %s44 = scalar_lea.vmem %s1, %s43
    %s45 = sadd.s32 0, 0
    %s46 = sadd.s32 0, 0
    %s47 = smul.u32 8, %s46
    %p48 = scmp.lt.s32.totalorder %s47, 7
    %s49 = scalar_select %p48, %s47, 7
    %s50 = smul.addr %s49, 8
    %s51 = scalar_lea.vmem %s2, %s50
    %s52 = sadd.s32 0, 0
    %s53 = smul.u32 8, %s52
    %p54 = scmp.eq.s32.totalorder 0, 0
    // Predicated region
    $region14: #{tpu_custom_call.1} parent=1 // pred_check
      %p55 = pneg %p54
    $region15: #{tpu_custom_call.1} parent=1 // pred_check_branch
      %57 = sbr.rel (%p55) target = $region17
    $region16: #{tpu_custom_call.1} parent=1 // pred_region
      %vm58 = vcmask 261120
      %59 = vst.msk [vmem:[#allocation2] sm:$0xff] %vm58, 0.0
      %60 = vst.msk [vmem:[#allocation2 + $0x8] sm:$0xff] %vm58, 0.0
    $region17: #{tpu_custom_call.1} parent=1 // pred_fallthru
      _
    %v61 = vld [vmem:[%s0] sm:$0xff]
    %v62 = vld [vmem:[%s0 + $0x8] sm:$0xff]
    %v63 = vld [vmem:[%s44] sm:$0xff]
    %v64 = vld [vmem:[%s44 + $0x8] sm:$0xff]
    %v65 = vld [vmem:[%s44 + $0x10] sm:$0xff]
    %v66 = vld [vmem:[%s44 + $0x18] sm:$0xff]
    %vm67 = vcmask 261120
    %v69 = vsel %vm67, %v61, 0
    %v72 = vsel %vm67, %v62, 0
    %74 = vmatprep.subr.mxu0 0.0
    %75 = vmatpush1.msra.mxu0 %v63
    %76 = vmatprep.subr.mxu0 0.0
    %77 = vmatpush1.msra.mxu0 %v64
    %78 = vmatprep.subr.mxu0 0.0
    %79 = vmatpush1.msra.mxu0 %v65
    %80 = vmatprep.subr.mxu0 0.0
    %81 = vmatpush1.msra.mxu0 %v66
    %82 = vmatprep.subr.mxu0 0.0
    %83 = vmatpush1.msra.mxu0 0.0
    %84 = vmatprep.subr.mxu0 0.0
    %85 = vmatpush1.msra.mxu0 0.0
    %86 = vmatprep.subr.mxu0 0.0
    %87 = vmatpush1.msra.mxu0 0.0
    %88 = vmatprep.subr.mxu0 0.0
    %89 = vmatpush1.msra.mxu0 0.0
    %90 = vmatprep.subr.mxu0 0.0
    %91 = vmatpush1.msra.mxu0 0.0
    %92 = vmatprep.subr.mxu0 0.0
    %93 = vmatpush1.msra.mxu0 0.0
    %94 = vmatprep.subr.mxu0 0.0
    %95 = vmatpush1.msra.mxu0 0.0
    %96 = vmatprep.subr.mxu0 0.0
    %97 = vmatpush1.msra.mxu0 0.0
    %98 = vmatprep.subr.mxu0 0.0
    %99 = vmatpush1.msra.mxu0 0.0
    %100 = vmatprep.subr.mxu0 0.0
    %101 = vmatpush1.msra.mxu0 0.0
    %102 = vmatprep.subr.mxu0 0.0
    %103 = vmatpush1.msra.mxu0 0.0
    %104 = vmatprep.subr.mxu0 0.0
    %105 = vmatpush1.msra.mxu0 0.0
    %106 = vmatprep.subr.mxu0 0.0
    %107 = vmatpush1.msra.mxu0 0.0
    %108 = vmatprep.subr.mxu0 0.0
    %109 = vmatpush1.msra.mxu0 0.0
    %110 = vmatprep.subr.mxu0 0.0
    %111 = vmatpush1.msra.mxu0 0.0
    %112 = vmatprep.subr.mxu0 0.0
    %113 = vmatpush1.msra.mxu0 0.0
    %114 = vmatprep.subr.mxu0 0.0
    %115 = vmatpush1.msra.mxu0 0.0
    %116 = vmatprep.subr.mxu0 0.0
    %117 = vmatpush1.msra.mxu0 0.0
    %118 = vmatprep.subr.mxu0 0.0
    %119 = vmatpush1.msra.mxu0 0.0
    %120 = vmatprep.subr.mxu0 0.0
    %121 = vmatpush1.msra.mxu0 0.0
    %122 = vmatprep.subr.mxu0 0.0
    %123 = vmatpush1.msra.mxu0 0.0
    %124 = vmatprep.subr.mxu0 0.0
    %125 = vmatpush1.msra.mxu0 0.0
    %126 = vmatprep.subr.mxu0 0.0
    %127 = vmatpush1.msra.mxu0 0.0
    %128 = vmatprep.subr.mxu0 0.0
    %129 = vmatpush1.msra.mxu0 0.0
    %130 = vmatprep.subr.mxu0 0.0
    %131 = vmatpush1.msra.mxu0 0.0
    %132 = vmatprep.subr.mxu0 0.0
    %133 = vmatpush1.msra.mxu0 0.0
    %134 = vmatprep.subr.mxu0 0.0
    %135 = vmatpush1.msra.mxu0 0.0
    %136 = vmatprep.subr.mxu0 0.0
    %137 = vmatpush1.msra.mxu0 0.0
    %138 = vmatprep.mubr.f32.mxu0 0.0
    %139 = vmatmul.mubr.f32.gmra.mrb[0].mxu0 %v69
    %v140 = vpop.f32.mrb[0].mxu0
    %v141 = vadd.f32 0.0, %v140
    %v142 = vpop.f32.mrb[0].mxu0
    %143 = vmatprep.mubr.f32.mxu0 0.0
    %144 = vmatmul.mubr.f32.gmra.mrb[0].mxu0 %v72
    %v145 = vpop.f32.mrb[0].mxu0
    %v146 = vadd.f32 0.0, %v145
    %v147 = vpop.f32.mrb[0].mxu0
    %148 = vdwg.mxu0
    %v149 = vsub.f32 0.0, %v141
    %v150 = vsub.f32 0.0, %v146
    %v151 = vmul.f32 %v149, 1.442695
    %v152 = vpow.pop %v151
    %v153 = vmul.f32 %v150, 1.442695
    %v154 = vpow.pop %v153
    %v155 = vadd.f32 %v152, 1.0
    %v156 = vadd.f32 %v154, 1.0
    %v157 = vrcp.pop %v155
    %v158 = vrcp.pop %v156
    %v159 = vmul.f32 %v141, %v157
    %v160 = vmul.f32 %v146, %v158
    %163 = vrot.lane.b32.xlu0 %v141, 64
    %v164 = vpop.permute.xlu0 %163
    %165 = vrot.lane.b32.xlu0 %v146, 64
    %v166 = vpop.permute.xlu0 %165
    %v169 = vmul.f32 %v159, %v164
    %v170 = vmul.f32 %v160, %v166
    %v171 = vld [vmem:[#allocation2] sm:$0xff]
    %v172 = vld [vmem:[#allocation2 + $0x8] sm:$0xff]
    %v173 = vld [vmem:[%s51] sm:$0xff]
    %v174 = vld [vmem:[%s51 + $0x8] sm:$0xff]
    %v175 = vld [vmem:[%s51 + $0x10] sm:$0xff]
    %v176 = vld [vmem:[%s51 + $0x18] sm:$0xff]
    %v177 = vld [vmem:[%s51 + $0x20] sm:$0xff]
    %v178 = vld [vmem:[%s51 + $0x28] sm:$0xff]
    %v179 = vld [vmem:[%s51 + $0x30] sm:$0xff]
    %v180 = vld [vmem:[%s51 + $0x38] sm:$0xff]
    %vm181 = vcmask 523264
    %v183 = vsel %vm181, %v169, 0
    %v186 = vsel %vm181, %v170, 0
    %188 = vmatprep.subr.mxu0 0.0
    %189 = vmatpush1.msra.mxu0 %v173
    %190 = vmatprep.subr.mxu0 0.0
    %191 = vmatpush1.msra.mxu0 %v174
    %192 = vmatprep.subr.mxu0 0.0
    %193 = vmatpush1.msra.mxu0 %v175
    %194 = vmatprep.subr.mxu0 0.0
    %195 = vmatpush1.msra.mxu0 %v176
    %196 = vmatprep.subr.mxu0 0.0
    %197 = vmatpush1.msra.mxu0 %v177
    %198 = vmatprep.subr.mxu0 0.0
    %199 = vmatpush1.msra.mxu0 %v178
    %200 = vmatprep.subr.mxu0 0.0
    %201 = vmatpush1.msra.mxu0 %v179
    %202 = vmatprep.subr.mxu0 0.0
    %203 = vmatpush1.msra.mxu0 %v180
    %204 = vmatprep.subr.mxu0 0.0
    %205 = vmatpush1.msra.mxu0 0.0
    %206 = vmatprep.subr.mxu0 0.0
    %207 = vmatpush1.msra.mxu0 0.0
    %208 = vmatprep.subr.mxu0 0.0
    %209 = vmatpush1.msra.mxu0 0.0
    %210 = vmatprep.subr.mxu0 0.0
    %211 = vmatpush1.msra.mxu0 0.0
    %212 = vmatprep.subr.mxu0 0.0
    %213 = vmatpush1.msra.mxu0 0.0
    %214 = vmatprep.subr.mxu0 0.0
    %215 = vmatpush1.msra.mxu0 0.0
    %216 = vmatprep.subr.mxu0 0.0
    %217 = vmatpush1.msra.mxu0 0.0
    %218 = vmatprep.subr.mxu0 0.0
    %219 = vmatpush1.msra.mxu0 0.0
    %220 = vmatprep.subr.mxu0 0.0
    %221 = vmatpush1.msra.mxu0 0.0
    %222 = vmatprep.subr.mxu0 0.0
    %223 = vmatpush1.msra.mxu0 0.0
    %224 = vmatprep.subr.mxu0 0.0
    %225 = vmatpush1.msra.mxu0 0.0
    %226 = vmatprep.subr.mxu0 0.0
    %227 = vmatpush1.msra.mxu0 0.0
    %228 = vmatprep.subr.mxu0 0.0
    %229 = vmatpush1.msra.mxu0 0.0
    %230 = vmatprep.subr.mxu0 0.0
    %231 = vmatpush1.msra.mxu0 0.0
    %232 = vmatprep.subr.mxu0 0.0
    %233 = vmatpush1.msra.mxu0 0.0
    %234 = vmatprep.subr.mxu0 0.0
    %235 = vmatpush1.msra.mxu0 0.0
    %236 = vmatprep.subr.mxu0 0.0
    %237 = vmatpush1.msra.mxu0 0.0
    %238 = vmatprep.subr.mxu0 0.0
    %239 = vmatpush1.msra.mxu0 0.0
    %240 = vmatprep.subr.mxu0 0.0
    %241 = vmatpush1.msra.mxu0 0.0
    %242 = vmatprep.subr.mxu0 0.0
    %243 = vmatpush1.msra.mxu0 0.0
    %244 = vmatprep.subr.mxu0 0.0
    %245 = vmatpush1.msra.mxu0 0.0
    %246 = vmatprep.subr.mxu0 0.0
    %247 = vmatpush1.msra.mxu0 0.0
    %248 = vmatprep.subr.mxu0 0.0
    %249 = vmatpush1.msra.mxu0 0.0
    %250 = vmatprep.subr.mxu0 0.0
    %251 = vmatpush1.msra.mxu0 0.0
    %252 = vmatprep.mubr.f32.mxu0 0.0
    %253 = vmatmul.mubr.f32.gmra.mrb[0].mxu0 %v183
    %v254 = vpop.f32.mrb[0].mxu0
    %v255 = vadd.f32 0.0, %v254
    %v256 = vpop.f32.mrb[0].mxu0
    %257 = vmatprep.mubr.f32.mxu0 0.0
    %258 = vmatmul.mubr.f32.gmra.mrb[0].mxu0 %v186
    %v259 = vpop.f32.mrb[0].mxu0
    %v260 = vadd.f32 0.0, %v259
    %v261 = vpop.f32.mrb[0].mxu0
    %262 = vdwg.mxu0
    %v263 = vadd.f32 %v171, %v255
    %v264 = vadd.f32 %v172, %v260
    %265 = vst.msk [vmem:[#allocation2] sm:$0xff] %vm67, %v263
    %266 = vst.msk [vmem:[#allocation2 + $0x8] sm:$0xff] %vm67, %v264
    // Predicated region
    $region18: #{tpu_custom_call.1} parent=1 // pred_check
      %p267 = pneg %p54
    $region19: #{tpu_custom_call.1} parent=1 // pred_check_branch
      %269 = sbr.rel (%p267) target = $region21
    $region20: #{tpu_custom_call.1} parent=1 // pred_region
      %v270 = vld [vmem:[#allocation2] sm:$0xff]
      %v271 = vld [vmem:[#allocation2 + $0x8] sm:$0xff]
      %272 = vst.msk [vmem:[#allocation3] sm:$0xff] %vm67, %v270
      %273 = vst.msk [vmem:[#allocation3 + $0x8] sm:$0xff] %vm67, %v271
    $region21: #{tpu_custom_call.1} parent=1 // pred_fallthru
      _
    // Predicated region
    $region22: #{tpu_custom_call.1} parent=1 // pred_check
      _
    $region23: #{tpu_custom_call.1} parent=1 // pred_check_branch
      %275 = sbr.rel (0) target = $region25
    $region24: #{tpu_custom_call.1} parent=1 // pred_region
      %s277 = ssub.s32 256, 256
      %278 = vsyncadd [#allocation4], %s277
      %s279 = sshll.u32 [#allocation3], 4
      %s280 = int_to_ptr.vmem [resolvable:$true] %s279
      %285 = dma.vmem_to_hbm [thread:$0]  %s280, 256, %s3, [#allocation4], 128, 128, 8
    $region25: #{tpu_custom_call.1} parent=1 // pred_fallthru
      _
    // Predicated region
    $region26: #{tpu_custom_call.1} parent=1 // pred_check
      _
    $region27: #{tpu_custom_call.1} parent=1 // pred_check_branch
      %287 = sbr.rel (0) target = $region29
    $region28: #{tpu_custom_call.1} parent=1 // pred_region
      %288 = dma.done [#allocation4], 256
    $region29: #{tpu_custom_call.1} parent=1 // pred_fallthru
      _
    %289 = vsyncpa [#allocation4], 1

</llo_original>
